<compile_context>
chip_gen: v7x
topology: tpu7x:2x2x1
jax: 0.10.0
libtpu: 0.0.40
codegen_flags: <defaults>
</compile_context>

<pallas_src>
import functools
import math

import jax
import jax.numpy as jnp
from jax.experimental import pallas as pl
from jax.experimental.pallas import tpu as pltpu

_INV_SQRT2 = 1.0 / math.sqrt(2.0)


def _simple_classifier_kernel(x_ref, w1_ref, b1_ref, gamma_ref, beta_ref,
                              w2_ref, b2_ref, o_ref, *, hid_real, matmul_dtype):
    # ---- Linear 1 (MXU, bf16 operands / f32 accumulation by default) ----
    h = jnp.dot(x_ref[...].astype(matmul_dtype),
                w1_ref[...].astype(matmul_dtype),
                preferred_element_type=jnp.float32)
    h = h + b1_ref[...].astype(jnp.float32)

    # ---- GeLU (exact erf form, matches torch.erf-based gelu) ----
    # TODO(synk): a tanh-approx GeLU would move this to the EUP slot, but the
    # module spec uses the exact erf form, so keep it faithful.
    h = h * 0.5 * (1.0 + jax.lax.erf(h * _INV_SQRT2))

    # ---- LayerNorm over the real hidden width (eps=1e-12, BertLayerNorm) ----
    # Padded hidden columns are exactly zero (zero-padded w1/b1), so plain sums
    # give the correct mean; only the centered term needs a lane mask.
    hid_pad = h.shape[-1]
    lane = jax.lax.broadcasted_iota(jnp.int32, (1, hid_pad), 1)
    mask = lane < hid_real
    inv_n = 1.0 / float(hid_real)
    mean = jnp.sum(h, axis=-1, keepdims=True) * inv_n
    centered = jnp.where(mask, h - mean, 0.0)
    var = jnp.sum(centered * centered, axis=-1, keepdims=True) * inv_n
    hn = centered * jax.lax.rsqrt(var + 1e-12)
    hn = hn * gamma_ref[...].astype(jnp.float32) + beta_ref[...].astype(jnp.float32)

    # ---- Linear 2 (MXU) ----
    out = jnp.dot(hn.astype(matmul_dtype),
                  w2_ref[...].astype(matmul_dtype),
                  preferred_element_type=jnp.float32)
    out = out + b2_ref[...].astype(jnp.float32)
    o_ref[...] = out.astype(o_ref.dtype)


def _round_up(n, m):
    return ((n + m - 1) // m) * m


def _pad2d(a, rows, cols):
    r, c = a.shape
    if (r, c) == (rows, cols):
        return a
    return jnp.pad(a, ((0, rows - r), (0, cols - c)))


def simple_classifier(x, w1, b1, gamma, beta, w2, b2, *,
                      block_rows=256,
                      matmul_dtype=jnp.bfloat16,
                      vmem_limit_bytes=48 * 1024 * 1024):
    """x: (B, in_dim); w1: (in_dim, hid); b1/gamma/beta: (hid,);
    w2: (hid, out_dim); b2: (out_dim,)  ->  (B, out_dim)."""
    B, in_dim = x.shape
    hid = w1.shape[1]
    out_dim = w2.shape[1]

    # Lane-dense (x128) feature padding; batch padded to the row tile.
    IN = _round_up(in_dim, 128)
    HID = _round_up(hid, 128)
    OUT = _round_up(out_dim, 128)
    TB = min(block_rows, _round_up(B, 8))
    BP = _round_up(B, TB)

    f32 = jnp.float32
    xp = _pad2d(x.astype(f32), BP, IN)
    w1p = _pad2d(w1.astype(f32), IN, HID).astype(matmul_dtype)
    w2p = _pad2d(w2.astype(f32), HID, OUT).astype(matmul_dtype)
    b1p = _pad2d(b1.reshape(1, -1).astype(f32), 1, HID)
    gp = _pad2d(gamma.reshape(1, -1).astype(f32), 1, HID)
    btp = _pad2d(beta.reshape(1, -1).astype(f32), 1, HID)
    b2p = _pad2d(b2.reshape(1, -1).astype(f32), 1, OUT)

    kernel = functools.partial(_simple_classifier_kernel,
                               hid_real=hid, matmul_dtype=matmul_dtype)
    resident = lambda shape: pl.BlockSpec(shape, lambda i: (0, 0))

    out_p = pl.pallas_call(
        kernel,
        out_shape=jax.ShapeDtypeStruct((BP, OUT), x.dtype),
        grid=(BP // TB,),
        in_specs=[
            pl.BlockSpec((TB, IN), lambda i: (i, 0)),   # x: tiled over batch
            resident((IN, HID)),                        # w1: fetched once
            resident((1, HID)),                         # b1
            resident((1, HID)),                         # gamma
            resident((1, HID)),                         # beta
            resident((HID, OUT)),                       # w2
            resident((1, OUT)),                         # b2
        ],
        out_specs=pl.BlockSpec((TB, OUT), lambda i: (i, 0)),
        compiler_params=pltpu.CompilerParams(
            dimension_semantics=("parallel",),   # shard batch tiles across TCs (v7x)
            vmem_limit_bytes=vmem_limit_bytes,   # explicit budget; fits v7x 64 MiB
        ),
    )(xp, w1p, b1p, gp, btp, w2p, b2p)

    return out_p[:B, :out_dim]


def init_params(key, in_dim, hid_dim, out_dim, dtype=jnp.float32):
    k1, k2, k3, k4 = jax.random.split(key, 4)
    # Deterministic synthetic init (uniform like torch.nn.Linear default).
    lim1 = 1.0 / math.sqrt(in_dim)
    lim2 = 1.0 / math.sqrt(hid_dim)
    w1 = jax.random.uniform(k1, (in_dim, hid_dim), dtype, -lim1, lim1)
    b1 = jax.random.uniform(k2, (hid_dim,), dtype, -lim1, lim1)
    gamma = jnp.ones((hid_dim,), dtype)   # LayerNorm weight
    beta = jnp.zeros((hid_dim,), dtype)   # LayerNorm bias
    w2 = jax.random.uniform(k3, (hid_dim, out_dim), dtype, -lim2, lim2)
    b2 = jax.random.uniform(k4, (out_dim,), dtype, -lim2, lim2)
    return w1, b1, gamma, beta, w2, b2


def reference_forward(x, w1, b1, gamma, beta, w2, b2, *,
                      matmul_dtype=jnp.float32):
    h = jnp.dot(x.astype(matmul_dtype), w1.astype(matmul_dtype),
                preferred_element_type=jnp.float32) + b1
    h = h * 0.5 * (1.0 + jax.lax.erf(h * _INV_SQRT2))
    mean = jnp.mean(h, axis=-1, keepdims=True)
    var = jnp.mean(jnp.square(h - mean), axis=-1, keepdims=True)
    h = (h - mean) * jax.lax.rsqrt(var + 1e-12) * gamma + beta
    return jnp.dot(h.astype(matmul_dtype), w2.astype(matmul_dtype),
                   preferred_element_type=jnp.float32) + b2


if __name__ == "__main__":
    B, in_dim, hid_dim, out_dim = 8, 32, 32, 16
    key = jax.random.PRNGKey(0)
    kx, kp = jax.random.split(key)
    x = jax.random.normal(kx, (B, in_dim), jnp.float32)
    params = init_params(kp, in_dim, hid_dim, out_dim)

    # Exact-precision path (f32 matmuls): must match module semantics tightly.
    out_f32 = simple_classifier(x, *params, matmul_dtype=jnp.float32)
    jax.block_until_ready(out_f32)
    ref_f32 = reference_forward(x, *params, matmul_dtype=jnp.float32)
    assert out_f32.shape == (B, out_dim)
    assert jnp.allclose(out_f32, ref_f32, atol=1e-4, rtol=1e-4), "f32 path mismatch"

    # Fast path (default): bf16 MXU operands with f32 accumulation.
    out_bf16 = simple_classifier(x, *params)
    jax.block_until_ready(out_bf16)
    ref_bf16 = reference_forward(x, *params, matmul_dtype=jnp.bfloat16)
    assert out_bf16.shape == (B, out_dim)
    assert jnp.allclose(out_bf16, ref_bf16, atol=5e-4, rtol=5e-4), "bf16 path mismatch"
    assert jnp.allclose(out_bf16, ref_f32, atol=5e-2, rtol=5e-2), "bf16 path drift"

    print("KERNEL_OK")
</pallas_src>

<mosaic_0001>
module attributes {stable_mosaic.version = 11 : i64} {
  func.func @_simple_classifier_kernel(%arg0: i32, %arg1: memref<8x128xf32, #tpu.memory_space<vmem>>, %arg2: memref<128x128xf32, #tpu.memory_space<vmem>>, %arg3: memref<1x128xf32, #tpu.memory_space<vmem>>, %arg4: memref<1x128xf32, #tpu.memory_space<vmem>>, %arg5: memref<1x128xf32, #tpu.memory_space<vmem>>, %arg6: memref<128x128xf32, #tpu.memory_space<vmem>>, %arg7: memref<1x128xf32, #tpu.memory_space<vmem>>, %arg8: memref<8x128xf32, #tpu.memory_space<vmem>>) attributes {dimension_semantics = [#tpu.dimension_semantics<parallel>], iteration_bounds = array<i64: 1>, scalar_prefetch = 0 : i64, scratch_operands = 0 : i64, tpu.core_type = #tpu.core_type<tc>, window_params = [{transform_indices = @transform_0, window_bounds = array<i64: 8, 128>}, {pipeline_mode = #tpu.pipeline_mode<synchronous>, transform_indices = @transform_1, window_bounds = array<i64: 128, 128>}, {pipeline_mode = #tpu.pipeline_mode<synchronous>, transform_indices = @transform_2, window_bounds = array<i64: 1, 128>}, {pipeline_mode = #tpu.pipeline_mode<synchronous>, transform_indices = @transform_3, window_bounds = array<i64: 1, 128>}, {pipeline_mode = #tpu.pipeline_mode<synchronous>, transform_indices = @transform_4, window_bounds = array<i64: 1, 128>}, {pipeline_mode = #tpu.pipeline_mode<synchronous>, transform_indices = @transform_5, window_bounds = array<i64: 128, 128>}, {pipeline_mode = #tpu.pipeline_mode<synchronous>, transform_indices = @transform_6, window_bounds = array<i64: 1, 128>}, {transform_indices = @transform_7, window_bounds = array<i64: 8, 128>}]} {
    %c0 = arith.constant 0 : index
    %c0_0 = arith.constant 0 : index
    %0 = vector.load %arg1[%c0, %c0_0] : memref<8x128xf32, #tpu.memory_space<vmem>>, vector<8x128xf32>
    %c0_1 = arith.constant 0 : index
    %c0_2 = arith.constant 0 : index
    %1 = vector.load %arg2[%c0_1, %c0_2] : memref<128x128xf32, #tpu.memory_space<vmem>>, vector<128x128xf32>
    %cst = arith.constant dense<0.000000e+00> : vector<8x128xf32>
    %2 = tpu.matmul %0, %1, %cst {dimension_numbers = #tpu.dot_dimension_numbers<[1], [0], [0], [1], [0, 0, 1, 1], [], []>} : vector<8x128xf32>, vector<128x128xf32>, vector<8x128xf32> -> vector<8x128xf32>
    %c0_3 = arith.constant 0 : index
    %c0_4 = arith.constant 0 : index
    %3 = vector.load %arg3[%c0_3, %c0_4] : memref<1x128xf32, #tpu.memory_space<vmem>>, vector<1x128xf32>
    %4 = vector.broadcast %3 : vector<1x128xf32> to vector<8x128xf32>
    %5 = arith.addf %2, %4 : vector<8x128xf32>
    %cst_5 = arith.constant 5.000000e-01 : f32
    %6 = vector.broadcast %cst_5 : f32 to vector<8x128xf32>
    %7 = arith.mulf %5, %6 : vector<8x128xf32>
    %cst_6 = arith.constant 0.707106769 : f32
    %8 = vector.broadcast %cst_6 : f32 to vector<8x128xf32>
    %9 = arith.mulf %5, %8 : vector<8x128xf32>
    %10 = math.erf %9 : vector<8x128xf32>
    %cst_7 = arith.constant 1.000000e+00 : f32
    %11 = vector.broadcast %cst_7 : f32 to vector<8x128xf32>
    %12 = arith.addf %11, %10 : vector<8x128xf32>
    %13 = arith.mulf %7, %12 : vector<8x128xf32>
    %14 = tpu.iota {dimensions = array<i32: 1>} : vector<1x128xi32>
    %c32_i32 = arith.constant 32 : i32
    %15 = vector.broadcast %c32_i32 : i32 to vector<1x128xi32>
    %16 = arith.cmpi slt, %14, %15 : vector<1x128xi32>
    %cst_8 = arith.constant dense<0.000000e+00> : vector<8xf32>
    %17 = vector.multi_reduction <add>, %13, %cst_8 [1] : vector<8x128xf32> to vector<8xf32>
    %18 = vector.shape_cast %17 : vector<8xf32> to vector<8x1xf32>
    %cst_9 = arith.constant 3.125000e-02 : f32
    %19 = vector.broadcast %cst_9 : f32 to vector<8x1xf32>
    %20 = arith.mulf %18, %19 : vector<8x1xf32>
    %21 = vector.broadcast %20 : vector<8x1xf32> to vector<8x128xf32>
    %22 = arith.subf %13, %21 : vector<8x128xf32>
    %cst_10 = arith.constant 0.000000e+00 : f32
    %23 = vector.shape_cast %16 : vector<1x128xi1> to vector<1x128xi1>
    %24 = vector.broadcast %23 : vector<1x128xi1> to vector<8x128xi1>
    %25 = vector.broadcast %cst_10 : f32 to vector<8x128xf32>
    %26 = arith.select %24, %22, %25 : vector<8x128xi1>, vector<8x128xf32>
    %27 = arith.mulf %26, %26 : vector<8x128xf32>
    %cst_11 = arith.constant dense<0.000000e+00> : vector<8xf32>
    %28 = vector.multi_reduction <add>, %27, %cst_11 [1] : vector<8x128xf32> to vector<8xf32>
    %29 = vector.shape_cast %28 : vector<8xf32> to vector<8x1xf32>
    %cst_12 = arith.constant 3.125000e-02 : f32
    %30 = vector.broadcast %cst_12 : f32 to vector<8x1xf32>
    %31 = arith.mulf %29, %30 : vector<8x1xf32>
    %cst_13 = arith.constant 9.99999996E-13 : f32
    %32 = vector.broadcast %cst_13 : f32 to vector<8x1xf32>
    %33 = arith.addf %31, %32 : vector<8x1xf32>
    %34 = math.rsqrt %33 : vector<8x1xf32>
    %35 = vector.broadcast %34 : vector<8x1xf32> to vector<8x128xf32>
    %36 = arith.mulf %26, %35 : vector<8x128xf32>
    %c0_14 = arith.constant 0 : index
    %c0_15 = arith.constant 0 : index
    %37 = vector.load %arg4[%c0_14, %c0_15] : memref<1x128xf32, #tpu.memory_space<vmem>>, vector<1x128xf32>
    %38 = vector.broadcast %37 : vector<1x128xf32> to vector<8x128xf32>
    %39 = arith.mulf %36, %38 : vector<8x128xf32>
    %c0_16 = arith.constant 0 : index
    %c0_17 = arith.constant 0 : index
    %40 = vector.load %arg5[%c0_16, %c0_17] : memref<1x128xf32, #tpu.memory_space<vmem>>, vector<1x128xf32>
    %41 = vector.broadcast %40 : vector<1x128xf32> to vector<8x128xf32>
    %42 = arith.addf %39, %41 : vector<8x128xf32>
    %c0_18 = arith.constant 0 : index
    %c0_19 = arith.constant 0 : index
    %43 = vector.load %arg6[%c0_18, %c0_19] : memref<128x128xf32, #tpu.memory_space<vmem>>, vector<128x128xf32>
    %cst_20 = arith.constant dense<0.000000e+00> : vector<8x128xf32>
    %44 = tpu.matmul %42, %43, %cst_20 {dimension_numbers = #tpu.dot_dimension_numbers<[1], [0], [0], [1], [0, 0, 1, 1], [], []>} : vector<8x128xf32>, vector<128x128xf32>, vector<8x128xf32> -> vector<8x128xf32>
    %c0_21 = arith.constant 0 : index
    %c0_22 = arith.constant 0 : index
    %45 = vector.load %arg7[%c0_21, %c0_22] : memref<1x128xf32, #tpu.memory_space<vmem>>, vector<1x128xf32>
    %46 = vector.broadcast %45 : vector<1x128xf32> to vector<8x128xf32>
    %47 = arith.addf %44, %46 : vector<8x128xf32>
    %c0_23 = arith.constant 0 : index
    %c0_24 = arith.constant 0 : index
    %48 = vector.load %arg8[%c0_23, %c0_24] : memref<8x128xf32, #tpu.memory_space<vmem>>, vector<8x128xf32>
    tpu.vector_store %arg8[%c0_23, %c0_24], %47 {strides = array<i32>} : memref<8x128xf32, #tpu.memory_space<vmem>>, vector<8x128xf32>,
    return
  }
  func.func @transform_0(%arg0: i32) -> (i32, i32) {
    %c0_i32 = arith.constant 0 : i32
    %c0_i32_0 = arith.constant 0 : i32
    return %arg0, %c0_i32 : i32, i32
  }
  func.func @transform_1(%arg0: i32) -> (i32, i32) {
    %c0_i32 = arith.constant 0 : i32
    %c0_i32_0 = arith.constant 0 : i32
    %c0_i32_1 = arith.constant 0 : i32
    return %c0_i32, %c0_i32_0 : i32, i32
  }
  func.func @transform_2(%arg0: i32) -> (i32, i32) {
    %c0_i32 = arith.constant 0 : i32
    %c0_i32_0 = arith.constant 0 : i32
    %c0_i32_1 = arith.constant 0 : i32
    return %c0_i32, %c0_i32_0 : i32, i32
  }
  func.func @transform_3(%arg0: i32) -> (i32, i32) {
    %c0_i32 = arith.constant 0 : i32
    %c0_i32_0 = arith.constant 0 : i32
    %c0_i32_1 = arith.constant 0 : i32
    return %c0_i32, %c0_i32_0 : i32, i32
  }
  func.func @transform_4(%arg0: i32) -> (i32, i32) {
    %c0_i32 = arith.constant 0 : i32
    %c0_i32_0 = arith.constant 0 : i32
    %c0_i32_1 = arith.constant 0 : i32
    return %c0_i32, %c0_i32_0 : i32, i32
  }
  func.func @transform_5(%arg0: i32) -> (i32, i32) {
    %c0_i32 = arith.constant 0 : i32
    %c0_i32_0 = arith.constant 0 : i32
    %c0_i32_1 = arith.constant 0 : i32
    return %c0_i32, %c0_i32_0 : i32, i32
  }
  func.func @transform_6(%arg0: i32) -> (i32, i32) {
    %c0_i32 = arith.constant 0 : i32
    %c0_i32_0 = arith.constant 0 : i32
    %c0_i32_1 = arith.constant 0 : i32
    return %c0_i32, %c0_i32_0 : i32, i32
  }
  func.func @transform_7(%arg0: i32) -> (i32, i32) {
    %c0_i32 = arith.constant 0 : i32
    %c0_i32_0 = arith.constant 0 : i32
    return %arg0, %c0_i32 : i32, i32
  }
}

</mosaic_0001>

<llo_original>
// kernel: tpu_custom_call.1
$region0: #{tpu_custom_call.1}
  #allocation0 [shape = 'u32[]', space=smem, size = 0x4, offset = 0x4, fixed_abs, tag = 'smem constant byte address 0x4 - core index']
  #allocation1 [shape = 'u32[144,128]{1,0:T(1,128)}', space=vmem, size = 0x12000, scoped, tag = 'internal scratch']
  %s0 = inlined_call_operand.hbm [shape: f32[8,128], index: 0, kind: input, shape index: {}]
  %s1 = inlined_call_operand.hbm [shape: f32[128,128], index: 1, kind: input, shape index: {}]
  %s2 = inlined_call_operand.vmem [shape: f32[1,128], index: 2, kind: input, shape index: {}]
  %s3 = inlined_call_operand.vmem [shape: f32[1,128], index: 3, kind: input, shape index: {}]
  %s4 = inlined_call_operand.vmem [shape: f32[1,128], index: 4, kind: input, shape index: {}]
  %s5 = inlined_call_operand.hbm [shape: f32[128,128], index: 5, kind: input, shape index: {}]
  %s6 = inlined_call_operand.vmem [shape: f32[1,128], index: 6, kind: input, shape index: {}]
  %s7 = inlined_call_operand.hbm [shape: f32[8,128], index: 7, kind: output, shape index: {}]
  %s8 = sld [smem:[#allocation0]]
  $region50: #{tpu_custom_call.1} parent=0
    _
  %s10 = ssub.s32 1, %s8
  %s11 = scalar_select 0, %s10, %s8
  $region1: #{tpu_custom_call.1} parent=0
    #allocation2 [shape = 'u8[4096]{0}', space=vmem, size = 0x1000, scoped, tag = 'input window, operand 0, single buffered']
    #allocation3 [shape = 's32[1]{0}', space=sflag, size = 0x4, scoped, tag = 'scoped memory for tpu_custom_call.1']
    #allocation4 [shape = 's32[1]{0}', space=sflag, size = 0x4, scoped, tag = 'scoped memory for tpu_custom_call.1']
    #allocation5 [shape = 'u8[65536]{0}', space=vmem, size = 0x10000, scoped, tag = 'input window, operand 1, single buffered']
    #allocation6 [shape = 's32[1]{0}', space=sflag, size = 0x4, scoped, tag = 'scoped memory for tpu_custom_call.1']
    #allocation7 [shape = 'u8[65536]{0}', space=vmem, size = 0x10000, scoped, tag = 'input window, operand 5, single buffered']
    #allocation8 [shape = 'u8[4096]{0}', space=vmem, size = 0x1000, scoped, tag = 'output window, operand 0, single buffered']
    %12 = vsyncpa [#allocation3], 0
    %13 = vsyncpa [#allocation6], 0
    %14 = vsyncpa [#allocation4], 0
    // Predicated region
    $region2: #{tpu_custom_call.1} parent=1 // pred_check
      _
    $region3: #{tpu_custom_call.1} parent=1 // pred_check_branch
      %16 = sbr.rel (0) target = $region5
    $region4: #{tpu_custom_call.1} parent=1 // pred_region
      %s18 = ssub.s32 128, 128
      %19 = vsyncadd [#allocation3], %s18
      %s21 = sshll.u32 [#allocation2], 4
      %s22 = int_to_ptr.vmem [resolvable:$true] %s21
      %24 = dma.hbm_to_vmem [thread:$0]  %s0, 128, %s22, [#allocation3]
    $region5: #{tpu_custom_call.1} parent=1 // pred_fallthru
      _
    // Predicated region
    $region6: #{tpu_custom_call.1} parent=1 // pred_check
      _
    $region7: #{tpu_custom_call.1} parent=1 // pred_check_branch
      %26 = sbr.rel (0) target = $region9
    $region8: #{tpu_custom_call.1} parent=1 // pred_region
      %s28 = ssub.s32 2048, 2048
      %29 = vsyncadd [#allocation6], %s28
      %s30 = sshll.u32 [#allocation5], 4
      %s31 = int_to_ptr.vmem [resolvable:$true] %s30
      %36 = dma.hbm_to_vmem [thread:$0]  %s1, 2048, %s31, [#allocation6], 128, 128, 8
    $region9: #{tpu_custom_call.1} parent=1 // pred_fallthru
      _
    // Predicated region
    $region10: #{tpu_custom_call.1} parent=1 // pred_check
      _
    $region11: #{tpu_custom_call.1} parent=1 // pred_check_branch
      %38 = sbr.rel (0) target = $region13
    $region12: #{tpu_custom_call.1} parent=1 // pred_region
      _
    $region13: #{tpu_custom_call.1} parent=1 // pred_fallthru
      _
    // Predicated region
    $region14: #{tpu_custom_call.1} parent=1 // pred_check
      _
    $region15: #{tpu_custom_call.1} parent=1 // pred_check_branch
      %40 = sbr.rel (0) target = $region17
    $region16: #{tpu_custom_call.1} parent=1 // pred_region
      _
    $region17: #{tpu_custom_call.1} parent=1 // pred_fallthru
      _
    // Predicated region
    $region18: #{tpu_custom_call.1} parent=1 // pred_check
      _
    $region19: #{tpu_custom_call.1} parent=1 // pred_check_branch
      %42 = sbr.rel (0) target = $region21
    $region20: #{tpu_custom_call.1} parent=1 // pred_region
      _
    $region21: #{tpu_custom_call.1} parent=1 // pred_fallthru
      _
    // Predicated region
    $region22: #{tpu_custom_call.1} parent=1 // pred_check
      _
    $region23: #{tpu_custom_call.1} parent=1 // pred_check_branch
      %44 = sbr.rel (0) target = $region25
    $region24: #{tpu_custom_call.1} parent=1 // pred_region
      %s46 = ssub.s32 2048, 2048
      %47 = vsyncadd [#allocation6], %s46
      %s48 = sshll.u32 [#allocation7], 4
      %s49 = int_to_ptr.vmem [resolvable:$true] %s48
      %54 = dma.hbm_to_vmem [thread:$0]  %s5, 2048, %s49, [#allocation6], 128, 128, 8
    $region25: #{tpu_custom_call.1} parent=1 // pred_fallthru
      _
    // Predicated region
    $region26: #{tpu_custom_call.1} parent=1 // pred_check
      _
    $region27: #{tpu_custom_call.1} parent=1 // pred_check_branch
      %56 = sbr.rel (0) target = $region29
    $region28: #{tpu_custom_call.1} parent=1 // pred_region
      _
    $region29: #{tpu_custom_call.1} parent=1 // pred_fallthru
      _
    // Predicated region
    $region30: #{tpu_custom_call.1} parent=1 // pred_check
      _
    $region31: #{tpu_custom_call.1} parent=1 // pred_check_branch
      %58 = sbr.rel (0) target = $region33
    $region32: #{tpu_custom_call.1} parent=1 // pred_region
      %59 = dma.done [#allocation3], 128
    $region33: #{tpu_custom_call.1} parent=1 // pred_fallthru
      _
    // Predicated region
    $region34: #{tpu_custom_call.1} parent=1 // pred_check
      _
    $region35: #{tpu_custom_call.1} parent=1 // pred_check_branch
      %61 = sbr.rel (0) target = $region37
    $region36: #{tpu_custom_call.1} parent=1 // pred_region
      %62 = dma.done [#allocation6], 2048
    $region37: #{tpu_custom_call.1} parent=1 // pred_fallthru
      _
    // Predicated region
    $region38: #{tpu_custom_call.1} parent=1 // pred_check
      _
    $region39: #{tpu_custom_call.1} parent=1 // pred_check_branch
      %64 = sbr.rel (0) target = $region41
    $region40: #{tpu_custom_call.1} parent=1 // pred_region
      %65 = dma.done [#allocation6], 2048
    $region41: #{tpu_custom_call.1} parent=1 // pred_fallthru
      _
    %v66 = vld [vmem:[#allocation2] sm:$0xff]
    %v67 = vld [vmem:[#allocation5] sm:$0xff]
    %v68 = vld [vmem:[#allocation5 + $0x8] sm:$0xff]
    %v69 = vld [vmem:[#allocation5 + $0x10] sm:$0xff]
    %v70 = vld [vmem:[#allocation5 + $0x18] sm:$0xff]
    %v71 = vld [vmem:[#allocation5 + $0x20] sm:$0xff]
    %v72 = vld [vmem:[#allocation5 + $0x28] sm:$0xff]
    %v73 = vld [vmem:[#allocation5 + $0x30] sm:$0xff]
    %v74 = vld [vmem:[#allocation5 + $0x38] sm:$0xff]
    %v75 = vld [vmem:[#allocation5 + $0x40] sm:$0xff]
    %v76 = vld [vmem:[#allocation5 + $0x48] sm:$0xff]
    %v77 = vld [vmem:[#allocation5 + $0x50] sm:$0xff]
    %v78 = vld [vmem:[#allocation5 + $0x58] sm:$0xff]
    %v79 = vld [vmem:[#allocation5 + $0x60] sm:$0xff]
    %v80 = vld [vmem:[#allocation5 + $0x68] sm:$0xff]
    %v81 = vld [vmem:[#allocation5 + $0x70] sm:$0xff]
    %v82 = vld [vmem:[#allocation5 + $0x78] sm:$0xff]
    %v83 = vld [vmem:[%s2] sm:$0x1]
    %v85 = vlaneseq
    %v86 = vshrl.u32 %v85, 7
    %v87 = vsub.s32 0, %v86
    %v88 = vrot.slane %v83, %v87
    %90 = vmatprep.subr.mxu0 0.0
    %91 = vmatpush1.msra.mxu0 %v67
    %92 = vmatprep.subr.mxu0 0.0
    %93 = vmatpush1.msra.mxu0 %v68
    %94 = vmatprep.subr.mxu0 0.0
    %95 = vmatpush1.msra.mxu0 %v69
    %96 = vmatprep.subr.mxu0 0.0
    %97 = vmatpush1.msra.mxu0 %v70
    %98 = vmatprep.subr.mxu0 0.0
    %99 = vmatpush1.msra.mxu0 %v71
    %100 = vmatprep.subr.mxu0 0.0
    %101 = vmatpush1.msra.mxu0 %v72
    %102 = vmatprep.subr.mxu0 0.0
    %103 = vmatpush1.msra.mxu0 %v73
    %104 = vmatprep.subr.mxu0 0.0
    %105 = vmatpush1.msra.mxu0 %v74
    %106 = vmatprep.subr.mxu0 0.0
    %107 = vmatpush1.msra.mxu0 %v75
    %108 = vmatprep.subr.mxu0 0.0
    %109 = vmatpush1.msra.mxu0 %v76
    %110 = vmatprep.subr.mxu0 0.0
    %111 = vmatpush1.msra.mxu0 %v77
    %112 = vmatprep.subr.mxu0 0.0
    %113 = vmatpush1.msra.mxu0 %v78
    %114 = vmatprep.subr.mxu0 0.0
    %115 = vmatpush1.msra.mxu0 %v79
    %116 = vmatprep.subr.mxu0 0.0
    %117 = vmatpush1.msra.mxu0 %v80
    %118 = vmatprep.subr.mxu0 0.0
    %119 = vmatpush1.msra.mxu0 %v81
    %120 = vmatprep.subr.mxu0 0.0
    %121 = vmatpush1.msra.mxu0 %v82
    %122 = vmatprep.subr.mxu0 0.0
    %123 = vmatpush1.msra.mxu0 0.0
    %124 = vmatprep.subr.mxu0 0.0
    %125 = vmatpush1.msra.mxu0 0.0
    %126 = vmatprep.subr.mxu0 0.0
    %127 = vmatpush1.msra.mxu0 0.0
    %128 = vmatprep.subr.mxu0 0.0
    %129 = vmatpush1.msra.mxu0 0.0
    %130 = vmatprep.subr.mxu0 0.0
    %131 = vmatpush1.msra.mxu0 0.0
    %132 = vmatprep.subr.mxu0 0.0
    %133 = vmatpush1.msra.mxu0 0.0
    %134 = vmatprep.subr.mxu0 0.0
    %135 = vmatpush1.msra.mxu0 0.0
    %136 = vmatprep.subr.mxu0 0.0
    %137 = vmatpush1.msra.mxu0 0.0
    %138 = vmatprep.subr.mxu0 0.0
    %139 = vmatpush1.msra.mxu0 0.0
    %140 = vmatprep.subr.mxu0 0.0
    %141 = vmatpush1.msra.mxu0 0.0
    %142 = vmatprep.subr.mxu0 0.0
    %143 = vmatpush1.msra.mxu0 0.0
    %144 = vmatprep.subr.mxu0 0.0
    %145 = vmatpush1.msra.mxu0 0.0
    %146 = vmatprep.subr.mxu0 0.0
    %147 = vmatpush1.msra.mxu0 0.0
    %148 = vmatprep.subr.mxu0 0.0
    %149 = vmatpush1.msra.mxu0 0.0
    %150 = vmatprep.subr.mxu0 0.0
    %151 = vmatpush1.msra.mxu0 0.0
    %152 = vmatprep.subr.mxu0 0.0
    %153 = vmatpush1.msra.mxu0 0.0
    %154 = vmatprep.mubr.f32.mxu0 0.0
    %155 = vmatmul.mubr.f32.gmra.mrb[0].mxu0 %v66
    %v156 = vpop.f32.mrb[0].mxu0
    %v157 = vadd.f32 %v88, %v156
    %v158 = vpop.f32.mrb[0].mxu0
    %159 = vdwg.mxu0
    %v160 = vmul.f32 %v157, 0.5
    %v161 = vmul.f32 %v157, 0.70710677
    %v162 = verf.f32.pop %v161
    %v163 = vadd.f32 %v162, 1.0
    %v164 = vmul.f32 %v160, %v163
    %v165 = vlaneseq
    %v166 = vand.u32 %v165, 127
    %vm167 = vcmp.lt.s32.totalorder %v166, 32
    %168 = vadd.xlane.f32.xlu0 %v164
    %v169 = vpop.xlane.xlu0 %168
    %v170 = vmul.f32 %v169, 0.03125
    %v171 = vsub.f32 %v164, %v170
    %v172 = vsel %vm167, 1, 0
    %vm173 = vcmp.eq.s32.totalorder %v172, 1
    %v174 = vsel %vm173, %v171, 0.0
    %v175 = vmul.f32 %v174, %v174
    %176 = vadd.xlane.f32.xlu0 %v175
    %v177 = vpop.xlane.xlu0 %176
    %v178 = vmul.f32 %v177, 0.03125
    %v179 = vadd.f32 %v178, 1e-12
    %v180 = vrsqrt.pop %v179
    %v181 = vmul.f32 %v174, %v180
    %v182 = vld [vmem:[%s3] sm:$0x1]
    %v184 = vlaneseq
    %v185 = vshrl.u32 %v184, 7
    %v186 = vsub.s32 0, %v185
    %v187 = vrot.slane %v182, %v186
    %v189 = vmul.f32 %v181, %v187
    %v190 = vld [vmem:[%s4] sm:$0x1]
    %v192 = vlaneseq
    %v193 = vshrl.u32 %v192, 7
    %v194 = vsub.s32 0, %v193
    %v195 = vrot.slane %v190, %v194
    %v197 = vadd.f32 %v189, %v195
    %v198 = vld [vmem:[#allocation7] sm:$0xff]
    %v199 = vld [vmem:[#allocation7 + $0x8] sm:$0xff]
    %v200 = vld [vmem:[#allocation7 + $0x10] sm:$0xff]
    %v201 = vld [vmem:[#allocation7 + $0x18] sm:$0xff]
    %v202 = vld [vmem:[#allocation7 + $0x20] sm:$0xff]
    %v203 = vld [vmem:[#allocation7 + $0x28] sm:$0xff]
    %v204 = vld [vmem:[#allocation7 + $0x30] sm:$0xff]
    %v205 = vld [vmem:[#allocation7 + $0x38] sm:$0xff]
    %v206 = vld [vmem:[#allocation7 + $0x40] sm:$0xff]
    %v207 = vld [vmem:[#allocation7 + $0x48] sm:$0xff]
    %v208 = vld [vmem:[#allocation7 + $0x50] sm:$0xff]
    %v209 = vld [vmem:[#allocation7 + $0x58] sm:$0xff]
    %v210 = vld [vmem:[#allocation7 + $0x60] sm:$0xff]
    %v211 = vld [vmem:[#allocation7 + $0x68] sm:$0xff]
    %v212 = vld [vmem:[#allocation7 + $0x70] sm:$0xff]
    %v213 = vld [vmem:[#allocation7 + $0x78] sm:$0xff]
    %v214 = vld [vmem:[%s6] sm:$0x1]
    %v216 = vlaneseq
    %v217 = vshrl.u32 %v216, 7
    %v218 = vsub.s32 0, %v217
    %v219 = vrot.slane %v214, %v218
    %221 = vmatprep.subr.mxu0 0.0
    %222 = vmatpush1.msra.mxu0 %v198
    %223 = vmatprep.subr.mxu0 0.0
    %224 = vmatpush1.msra.mxu0 %v199
    %225 = vmatprep.subr.mxu0 0.0
    %226 = vmatpush1.msra.mxu0 %v200
    %227 = vmatprep.subr.mxu0 0.0
    %228 = vmatpush1.msra.mxu0 %v201
    %229 = vmatprep.subr.mxu0 0.0
    %230 = vmatpush1.msra.mxu0 %v202
    %231 = vmatprep.subr.mxu0 0.0
    %232 = vmatpush1.msra.mxu0 %v203
    %233 = vmatprep.subr.mxu0 0.0
    %234 = vmatpush1.msra.mxu0 %v204
    %235 = vmatprep.subr.mxu0 0.0
    %236 = vmatpush1.msra.mxu0 %v205
    %237 = vmatprep.subr.mxu0 0.0
    %238 = vmatpush1.msra.mxu0 %v206
    %239 = vmatprep.subr.mxu0 0.0
    %240 = vmatpush1.msra.mxu0 %v207
    %241 = vmatprep.subr.mxu0 0.0
    %242 = vmatpush1.msra.mxu0 %v208
    %243 = vmatprep.subr.mxu0 0.0
    %244 = vmatpush1.msra.mxu0 %v209
    %245 = vmatprep.subr.mxu0 0.0
    %246 = vmatpush1.msra.mxu0 %v210
    %247 = vmatprep.subr.mxu0 0.0
    %248 = vmatpush1.msra.mxu0 %v211
    %249 = vmatprep.subr.mxu0 0.0
    %250 = vmatpush1.msra.mxu0 %v212
    %251 = vmatprep.subr.mxu0 0.0
    %252 = vmatpush1.msra.mxu0 %v213
    %253 = vmatprep.subr.mxu0 0.0
    %254 = vmatpush1.msra.mxu0 0.0
    %255 = vmatprep.subr.mxu0 0.0
    %256 = vmatpush1.msra.mxu0 0.0
    %257 = vmatprep.subr.mxu0 0.0
    %258 = vmatpush1.msra.mxu0 0.0
    %259 = vmatprep.subr.mxu0 0.0
    %260 = vmatpush1.msra.mxu0 0.0
    %261 = vmatprep.subr.mxu0 0.0
    %262 = vmatpush1.msra.mxu0 0.0
    %263 = vmatprep.subr.mxu0 0.0
    %264 = vmatpush1.msra.mxu0 0.0
    %265 = vmatprep.subr.mxu0 0.0
    %266 = vmatpush1.msra.mxu0 0.0
    %267 = vmatprep.subr.mxu0 0.0
    %268 = vmatpush1.msra.mxu0 0.0
    %269 = vmatprep.subr.mxu0 0.0
    %270 = vmatpush1.msra.mxu0 0.0
    %271 = vmatprep.subr.mxu0 0.0
    %272 = vmatpush1.msra.mxu0 0.0
    %273 = vmatprep.subr.mxu0 0.0
    %274 = vmatpush1.msra.mxu0 0.0
    %275 = vmatprep.subr.mxu0 0.0
    %276 = vmatpush1.msra.mxu0 0.0
    %277 = vmatprep.subr.mxu0 0.0
    %278 = vmatpush1.msra.mxu0 0.0
    %279 = vmatprep.subr.mxu0 0.0
    %280 = vmatpush1.msra.mxu0 0.0
    %281 = vmatprep.subr.mxu0 0.0
    %282 = vmatpush1.msra.mxu0 0.0
    %283 = vmatprep.subr.mxu0 0.0
    %284 = vmatpush1.msra.mxu0 0.0
    %285 = vmatprep.mubr.f32.mxu0 0.0
    %286 = vmatmul.mubr.f32.gmra.mrb[0].mxu0 %v197
    %v287 = vpop.f32.mrb[0].mxu0
    %v288 = vadd.f32 %v219, %v287
    %v289 = vpop.f32.mrb[0].mxu0
    %290 = vdwg.mxu0
    %291 = vst [vmem:[#allocation8] sm:$0xff] %v288
    // Predicated region
    $region42: #{tpu_custom_call.1} parent=1 // pred_check
      _
    $region43: #{tpu_custom_call.1} parent=1 // pred_check_branch
      %293 = sbr.rel (0) target = $region45
    $region44: #{tpu_custom_call.1} parent=1 // pred_region
      %s295 = ssub.s32 128, 128
      %296 = vsyncadd [#allocation4], %s295
      %s298 = sshll.u32 [#allocation8], 4
      %s299 = int_to_ptr.vmem [resolvable:$true] %s298
      %301 = dma.vmem_to_hbm [thread:$0]  %s299, 128, %s7, [#allocation4]
    $region45: #{tpu_custom_call.1} parent=1 // pred_fallthru
      _
    // Predicated region
    $region46: #{tpu_custom_call.1} parent=1 // pred_check
      _
    $region47: #{tpu_custom_call.1} parent=1 // pred_check_branch
      %303 = sbr.rel (0) target = $region49
    $region48: #{tpu_custom_call.1} parent=1 // pred_region
      %304 = dma.done [#allocation4], 128
    $region49: #{tpu_custom_call.1} parent=1 // pred_fallthru
      _
    %305 = vsyncpa [#allocation3], 1
    %306 = vsyncpa [#allocation6], 1
    %307 = vsyncpa [#allocation4], 1

</llo_original>
